<compile_context>
chip_gen: v7x
topology: tpu7x:2x2x1
jax: 0.10.0
libtpu: 0.0.40
codegen_flags: <defaults>
</compile_context>

<pallas_src>
import functools
import numpy as np
import jax
import jax.numpy as jnp
from jax.experimental import pallas as pl
from jax.experimental.pallas import tpu as pltpu


# -------------------- constant (input independent) builders --------------------

def build_C(num_fiducial):
    half = num_fiducial // 2
    x = np.linspace(-1.0, 1.0, half, dtype=np.float32)
    top = np.stack([x, -np.ones(half, np.float32)], axis=1)
    bot = np.stack([x, np.ones(half, np.float32)], axis=1)
    return np.concatenate([top, bot], axis=0)                       # [F, 2]


def build_P(I_r_size):
    H, W = I_r_size
    gx = (np.arange(-W, W, 2, dtype=np.float32) + 1.0) / np.float32(W)   # [W]
    gy = (np.arange(-H, H, 2, dtype=np.float32) + 1.0) / np.float32(H)   # [H]
    X, Y = np.meshgrid(gx, gy, indexing="ij")                            # [W, H]
    P = np.stack([X, Y], axis=2)                                         # [W, H, 2]
    P = np.transpose(P, (1, 0, 2))                                       # [H, W, 2]
    return P.reshape(-1, 2).astype(np.float32)                           # [H*W, 2]


def build_inv_delta_C(C):
    F = C.shape[0]
    diff = C[:, None, :] - C[None, :, :]
    hat = np.sqrt((diff ** 2).sum(-1)).astype(np.float32)
    np.fill_diagonal(hat, 1.0)
    hat = (hat ** 2) * np.log(hat)
    delta = np.concatenate([
        np.concatenate([np.ones((F, 1), np.float32), C, hat], axis=1),
        np.concatenate([np.zeros((2, 3), np.float32), C.T], axis=1),
        np.concatenate([np.zeros((1, 3), np.float32),
                        np.ones((1, F), np.float32)], axis=1),
    ], axis=0)
    # TODO(synk): torch.inverse has no Pallas equivalent; the (F+3)x(F+3)
    # inverse is input-independent and computed once host-side at init.
    return np.linalg.inv(delta).astype(np.float32)                   # [F+3, F+3]


def build_P_hat(C, P, eps=1e-6):
    F = C.shape[0]
    n = P.shape[0]
    diff = P[:, None, :] - C[None, :, :]                             # [n, F, 2]
    rbf_norm = np.sqrt((diff ** 2).sum(-1))                          # [n, F]
    rbf = (rbf_norm ** 2) * np.log(rbf_norm + eps)
    return np.concatenate(
        [np.ones((n, 1), np.float32), P, rbf], axis=1).astype(np.float32)  # [n, F+3]


# ------------------------- folded-weight construction ---------------------------

def fold_constants(fc_w, fc_b, num_fiducial, I_r_size):
    """Fold fc, inv_delta_C and P_hat into one [2F+1, 2n] matrix (bias as last row).

    out[b] = concat([cp_flat[b], 1.0]) @ A_aug, with A_aug columns interleaved
    (x0, y0, x1, y1, ...) so the [B, 2n] kernel output reshapes to [B, n, 2]
    for free.  All numpy / host-side; runs once at model init.
    """
    Fnum = num_fiducial
    fc_w = np.asarray(fc_w, np.float32)                              # [6, 2F]
    fc_b = np.asarray(fc_b, np.float32)                              # [6]
    C = build_C(Fnum)
    P = build_P(I_r_size)
    inv_delta_C = build_inv_delta_C(C)                               # [F+3, F+3]
    P_hat = build_P_hat(C, P)                                        # [n, F+3]
    n = P_hat.shape[0]

    M = P_hat @ inv_delta_C                                          # [n, F+3]
    M1 = M[:, :Fnum].T                                               # [F, n]
    M2 = M[:, Fnum:].T                                               # [3, n]

    w_t = fc_w.T                                                     # [2F, 6]
    A_parts, d_parts = [], []
    for c in range(2):
        Wc = w_t[:, c::2]                                            # [2F, 3]
        bc = fc_b[c::2]                                              # [3]
        SMc = np.zeros((2 * Fnum, n), np.float32)
        SMc[c::2, :] = M1                                            # select cp[:, :, c]
        A_parts.append(SMc + Wc @ M2)                                # [2F, n]
        d_parts.append(bc @ M2)                                      # [n]

    A = np.stack(A_parts, axis=-1).reshape(2 * Fnum, 2 * n)          # [2F, 2n] interleaved
    d = np.stack(d_parts, axis=-1).reshape(1, 2 * n)                 # [1, 2n]
    A_aug = np.concatenate([A, d], axis=0).astype(np.float32)        # [2F+1, 2n]
    return A_aug, n


# ------------------------------ Pallas kernel ----------------------------------

def _grid_gen_kernel(cp_ref, a_ref, o_ref):
    # Single lane-dense MXU matmul: [B_tile, 2F+1] @ [2F+1, 2n] (bias folded in).
    o_ref[...] = jnp.dot(cp_ref[...], a_ref[...],
                         preferred_element_type=jnp.float32)


# --------------------------------- builder --------------------------------------

def _round_up(x, m):
    return ((x + m - 1) // m) * m


def make_grid_generator(fc_w, fc_b, num_fiducial, I_r_size):
    """Fold constants ONCE and return a jitted forward(batch_C_prime) -> [B, n, 2]."""
    A_aug_np, n = fold_constants(fc_w, fc_b, num_fiducial, I_r_size)
    A_aug = jnp.asarray(A_aug_np)                                    # [2F+1, 2n]
    two_f = 2 * num_fiducial
    K = two_f + 1
    two_n = 2 * n

    @jax.jit
    def forward(batch_C_prime):
        B = batch_C_prime.shape[0]
        cp = batch_C_prime.astype(jnp.float32).reshape(B, two_f)
        # Pad batch to a multiple of 8 (f32 sublane tile); cap tiles at 128
        # rows and run a parallel 1-D grid over batch tiles so large batches
        # split across TensorCores with the folded weight VMEM-resident.
        B_tile = min(_round_up(B, 8), 128)
        B_pad = _round_up(B, B_tile)
        cp = jnp.pad(cp, ((0, B_pad - B), (0, 0)))
        cp_aug = jnp.concatenate(
            [cp, jnp.ones((B_pad, 1), jnp.float32)], axis=1)         # [B_pad, 2F+1]

        out_flat = pl.pallas_call(
            _grid_gen_kernel,
            out_shape=jax.ShapeDtypeStruct((B_pad, two_n), jnp.float32),
            grid=(B_pad // B_tile,),
            in_specs=[
                pl.BlockSpec((B_tile, K), lambda i: (i, 0)),          # streaming cp
                pl.BlockSpec((K, two_n), lambda i: (0, 0)),           # resident weight
            ],
            out_specs=pl.BlockSpec((B_tile, two_n), lambda i: (i, 0)),  # lane-dense out
            compiler_params=pltpu.CompilerParams(
                dimension_semantics=("parallel",)),
            cost_estimate=pl.CostEstimate(
                flops=2 * B_pad * K * two_n,
                transcendentals=0,
                bytes_accessed=4 * (B_pad * K + K * two_n + B_pad * two_n)),
        )(cp_aug, A_aug)

        return out_flat[:B].reshape(B, n, 2)

    return forward, n


# ------------------------------ pure-JAX reference ------------------------------

def reference_forward(batch_C_prime, I_r_size, fc_w, fc_b, num_fiducial):
    C = build_C(num_fiducial)
    P = build_P(I_r_size)
    idc = jnp.asarray(build_inv_delta_C(C))
    P_hat = jnp.asarray(build_P_hat(C, P))
    B = batch_C_prime.shape[0]
    ex = batch_C_prime.reshape(B, -1) @ fc_w.T + fc_b
    ex = ex.reshape(B, 3, 2)
    cpz = jnp.concatenate([batch_C_prime, ex], axis=1)
    T = jnp.einsum('ij,bjc->bic', idc, cpz)
    return jnp.einsum('nj,bjc->bnc', P_hat, T)


# ------------------------------------ main --------------------------------------

if __name__ == "__main__":
    num_fiducial = 20                      # F
    in_channels = num_fiducial * 2         # fc in_features
    B = 2
    I_r_size = (16, 16)                    # (H, W) -> n = 256 grid points

    key = jax.random.PRNGKey(0)
    k1, k2, k3 = jax.random.split(key, 3)
    batch_C_prime = jax.random.normal(k1, (B, num_fiducial, 2), dtype=jnp.float32)
    # deterministic synthetic fc params (nn.Linear(in_channels, 6))
    fc_w = 0.1 * jax.random.normal(k2, (6, in_channels), dtype=jnp.float32)
    fc_b = 0.1 * jax.random.normal(k3, (6,), dtype=jnp.float32)

    # Fold constants once at "model init"; the returned forward is jitted and
    # can be called per-step with no host-side fold / transfer work.
    forward, n = make_grid_generator(fc_w, fc_b, num_fiducial, I_r_size)

    out = forward(batch_C_prime)
    out = jax.block_until_ready(out)

    ref = reference_forward(batch_C_prime, I_r_size, fc_w, fc_b, num_fiducial)
    assert out.shape == (B, I_r_size[0] * I_r_size[1], 2), out.shape
    # NOTE: the constant folding reorders the FP reduction vs the two-stage
    # reference einsum; differences stay well within 1e-4 at these magnitudes.
    np.testing.assert_allclose(np.asarray(out), np.asarray(ref), rtol=1e-4, atol=1e-4)

    print("KERNEL_OK")
</pallas_src>

<mosaic_0001>
module attributes {stable_mosaic.version = 11 : i64} {
  func.func @_grid_gen_kernel(%arg0: i32, %arg1: memref<8x41xf32, #tpu.memory_space<vmem>>, %arg2: memref<41x512xf32, #tpu.memory_space<vmem>>, %arg3: memref<8x512xf32, #tpu.memory_space<vmem>>) attributes {dimension_semantics = [#tpu.dimension_semantics<parallel>], iteration_bounds = array<i64: 1>, scalar_prefetch = 0 : i64, scratch_operands = 0 : i64, tpu.core_type = #tpu.core_type<tc>, window_params = [{transform_indices = @transform_0, window_bounds = array<i64: 8, 41>}, {pipeline_mode = #tpu.pipeline_mode<synchronous>, transform_indices = @transform_1, window_bounds = array<i64: 41, 512>}, {transform_indices = @transform_2, window_bounds = array<i64: 8, 512>}]} {
    %c0 = arith.constant 0 : index
    %c0_0 = arith.constant 0 : index
    %0 = vector.load %arg1[%c0, %c0_0] : memref<8x41xf32, #tpu.memory_space<vmem>>, vector<8x41xf32>
    %c0_1 = arith.constant 0 : index
    %c0_2 = arith.constant 0 : index
    %1 = vector.load %arg2[%c0_1, %c0_2] : memref<41x512xf32, #tpu.memory_space<vmem>>, vector<41x512xf32>
    %cst = arith.constant dense<0.000000e+00> : vector<8x512xf32>
    %2 = tpu.matmul %0, %1, %cst {dimension_numbers = #tpu.dot_dimension_numbers<[1], [0], [0], [1], [0, 0, 1, 1], [], []>} : vector<8x41xf32>, vector<41x512xf32>, vector<8x512xf32> -> vector<8x512xf32>
    %c0_3 = arith.constant 0 : index
    %c0_4 = arith.constant 0 : index
    %3 = vector.load %arg3[%c0_3, %c0_4] : memref<8x512xf32, #tpu.memory_space<vmem>>, vector<8x512xf32>
    tpu.vector_store %arg3[%c0_3, %c0_4], %2 {strides = array<i32>} : memref<8x512xf32, #tpu.memory_space<vmem>>, vector<8x512xf32>,
    return
  }
  func.func @transform_0(%arg0: i32) -> (i32, i32) {
    %c0_i32 = arith.constant 0 : i32
    %c0_i32_0 = arith.constant 0 : i32
    return %arg0, %c0_i32 : i32, i32
  }
  func.func @transform_1(%arg0: i32) -> (i32, i32) {
    %c0_i32 = arith.constant 0 : i32
    %c0_i32_0 = arith.constant 0 : i32
    %c0_i32_1 = arith.constant 0 : i32
    return %c0_i32, %c0_i32_0 : i32, i32
  }
  func.func @transform_2(%arg0: i32) -> (i32, i32) {
    %c0_i32 = arith.constant 0 : i32
    %c0_i32_0 = arith.constant 0 : i32
    return %arg0, %c0_i32 : i32, i32
  }
}

</mosaic_0001>

<llo_original>
// kernel: forward.1
$region0: #{forward.1}
  #allocation0 [shape = 'u32[]', space=smem, size = 0x4, offset = 0x4, fixed_abs, tag = 'smem constant byte address 0x4 - core index']
  #allocation1 [shape = 'u32[144,128]{1,0:T(1,128)}', space=vmem, size = 0x12000, scoped, tag = 'internal scratch']
  %s0 = inlined_call_operand.vmem [shape: f32[8,41], index: 0, kind: input, shape index: {}]
  %s1 = inlined_call_operand.hbm [shape: f32[41,512], index: 1, kind: input, shape index: {}]
  %s2 = inlined_call_operand.vmem [shape: f32[8,512], index: 2, kind: output, shape index: {}]
  %s3 = sld [smem:[#allocation0]]
  $region22: #{forward.1} parent=0
    _
  %s5 = ssub.s32 1, %s3
  %s6 = scalar_select 0, %s5, %s3
  $region1: #{forward.1} parent=0
    #allocation2 [shape = 'u8[98304]{0}', space=vmem, size = 0x18000, scoped, tag = 'input window, operand 1, single buffered']
    #allocation3 [shape = 's32[1]{0}', space=sflag, size = 0x4, scoped, tag = 'scoped memory for forward.1']
    %7 = vsyncpa [#allocation3], 0
    // Predicated region
    $region2: #{forward.1} parent=1 // pred_check
      _
    $region3: #{forward.1} parent=1 // pred_check_branch
      %9 = sbr.rel (0) target = $region5
    $region4: #{forward.1} parent=1 // pred_region
      _
    $region5: #{forward.1} parent=1 // pred_fallthru
      _
    // Predicated region
    $region6: #{forward.1} parent=1 // pred_check
      _
    $region7: #{forward.1} parent=1 // pred_check_branch
      %11 = sbr.rel (0) target = $region9
    $region8: #{forward.1} parent=1 // pred_region
      %s13 = ssub.s32 3072, 3072
      %14 = vsyncadd [#allocation3], %s13
      %s15 = sshll.u32 [#allocation2], 4
      %s16 = int_to_ptr.vmem [resolvable:$true] %s15
      %21 = dma.hbm_to_vmem [thread:$0]  %s1, 3072, %s16, [#allocation3], 512, 512, 32
    $region9: #{forward.1} parent=1 // pred_fallthru
      _
    // Predicated region
    $region10: #{forward.1} parent=1 // pred_check
      _
    $region11: #{forward.1} parent=1 // pred_check_branch
      %23 = sbr.rel (0) target = $region13
    $region12: #{forward.1} parent=1 // pred_region
      %24 = dma.done [#allocation3], 3072
    $region13: #{forward.1} parent=1 // pred_fallthru
      _
    %v25 = vld [vmem:[%s0] sm:$0xff]
    %v26 = vld [vmem:[#allocation2] sm:$0xff]
    %v27 = vld [vmem:[#allocation2 + $0x8] sm:$0xff]
    %v28 = vld [vmem:[#allocation2 + $0x10] sm:$0xff]
    %v29 = vld [vmem:[#allocation2 + $0x18] sm:$0xff]
    %v30 = vld [vmem:[#allocation2 + $0x20] sm:$0xff]
    %v31 = vld [vmem:[#allocation2 + $0x28] sm:$0xff]
    %v32 = vld [vmem:[#allocation2 + $0x30] sm:$0xff]
    %v33 = vld [vmem:[#allocation2 + $0x38] sm:$0xff]
    %v34 = vld [vmem:[#allocation2 + $0x40] sm:$0xff]
    %v35 = vld [vmem:[#allocation2 + $0x48] sm:$0xff]
    %v36 = vld [vmem:[#allocation2 + $0x50] sm:$0xff]
    %v37 = vld [vmem:[#allocation2 + $0x58] sm:$0xff]
    %v38 = vld [vmem:[#allocation2 + $0x60] sm:$0xff]
    %v39 = vld [vmem:[#allocation2 + $0x68] sm:$0xff]
    %v40 = vld [vmem:[#allocation2 + $0x70] sm:$0xff]
    %v41 = vld [vmem:[#allocation2 + $0x78] sm:$0xff]
    %v42 = vld [vmem:[#allocation2 + $0x80] sm:$0xff]
    %v43 = vld [vmem:[#allocation2 + $0x88] sm:$0xff]
    %v44 = vld [vmem:[#allocation2 + $0x90] sm:$0xff]
    %v45 = vld [vmem:[#allocation2 + $0x98] sm:$0xff]
    %v46 = vld [vmem:[#allocation2 + $0xa0] sm:$0x1]
    %v47 = vld [vmem:[#allocation2 + $0xa8] sm:$0x1]
    %v48 = vld [vmem:[#allocation2 + $0xb0] sm:$0x1]
    %v49 = vld [vmem:[#allocation2 + $0xb8] sm:$0x1]
    %vm50 = vcmask 334848
    %v52 = vsel %vm50, %v25, 0
    %vm54 = vcmask 1040384
    %v56 = vsel %vm54, %v46, 0
    %v59 = vsel %vm54, %v47, 0
    %v62 = vsel %vm54, %v48, 0
    %v65 = vsel %vm54, %v49, 0
    %67 = vmatprep.subr.mxu0 %v27
    %68 = vmatpush1.msra.mxu0 %v26
    %69 = vmatprep.subr.mxu0 %v31
    %70 = vmatpush1.msra.mxu0 %v30
    %71 = vmatprep.subr.mxu0 %v35
    %72 = vmatpush1.msra.mxu0 %v34
    %73 = vmatprep.subr.mxu0 %v39
    %74 = vmatpush1.msra.mxu0 %v38
    %75 = vmatprep.subr.mxu0 %v43
    %76 = vmatpush1.msra.mxu0 %v42
    %77 = vmatprep.subr.mxu0 %v59
    %78 = vmatpush1.msra.mxu0 %v56
    %79 = vmatprep.subr.mxu0 0.0
    %80 = vmatpush1.msra.mxu0 0.0
    %81 = vmatprep.subr.mxu0 0.0
    %82 = vmatpush1.msra.mxu0 0.0
    %83 = vmatprep.subr.mxu0 0.0
    %84 = vmatpush1.msra.mxu0 0.0
    %85 = vmatprep.subr.mxu0 0.0
    %86 = vmatpush1.msra.mxu0 0.0
    %87 = vmatprep.subr.mxu0 0.0
    %88 = vmatpush1.msra.mxu0 0.0
    %89 = vmatprep.subr.mxu0 0.0
    %90 = vmatpush1.msra.mxu0 0.0
    %91 = vmatprep.subr.mxu0 0.0
    %92 = vmatpush1.msra.mxu0 0.0
    %93 = vmatprep.subr.mxu0 0.0
    %94 = vmatpush1.msra.mxu0 0.0
    %95 = vmatprep.subr.mxu0 0.0
    %96 = vmatpush1.msra.mxu0 0.0
    %97 = vmatprep.subr.mxu0 0.0
    %98 = vmatpush1.msra.mxu0 0.0
    %99 = vmatprep.subr.mxu0 0.0
    %100 = vmatpush1.msra.mxu0 0.0
    %101 = vmatprep.subr.mxu0 0.0
    %102 = vmatpush1.msra.mxu0 0.0
    %103 = vmatprep.subr.mxu0 0.0
    %104 = vmatpush1.msra.mxu0 0.0
    %105 = vmatprep.subr.mxu0 0.0
    %106 = vmatpush1.msra.mxu0 0.0
    %107 = vmatprep.subr.mxu0 0.0
    %108 = vmatpush1.msra.mxu0 0.0
    %109 = vmatprep.subr.mxu0 0.0
    %110 = vmatpush1.msra.mxu0 0.0
    %111 = vmatprep.subr.mxu0 0.0
    %112 = vmatpush1.msra.mxu0 0.0
    %113 = vmatprep.subr.mxu0 0.0
    %114 = vmatpush1.msra.mxu0 0.0
    %115 = vmatprep.subr.mxu0 0.0
    %116 = vmatpush1.msra.mxu0 0.0
    %117 = vmatprep.subr.mxu0 0.0
    %118 = vmatpush1.msra.mxu0 0.0
    %119 = vmatprep.subr.mxu0 0.0
    %120 = vmatpush1.msra.mxu0 0.0
    %121 = vmatprep.subr.mxu0 0.0
    %122 = vmatpush1.msra.mxu0 0.0
    %123 = vmatprep.subr.mxu0 0.0
    %124 = vmatpush1.msra.mxu0 0.0
    %125 = vmatprep.subr.mxu0 0.0
    %126 = vmatpush1.msra.mxu0 0.0
    %127 = vmatprep.subr.mxu0 0.0
    %128 = vmatpush1.msra.mxu0 0.0
    %129 = vmatprep.subr.mxu0 0.0
    %130 = vmatpush1.msra.mxu0 0.0
    %131 = vmatprep.mubr.f32.mxu0 0.0
    %132 = vmatmul.mubr.f32.gmra.mrb[0].mxu0 %v52
    %v133 = vpop.f32.mrb[0].mxu0
    %v134 = vadd.f32 0.0, %v133
    %v135 = vpop.f32.mrb[0].mxu0
    %v136 = vadd.f32 0.0, %v135
    %137 = vdwg.mxu0
    %138 = vmatprep.subr.mxu0 %v29
    %139 = vmatpush1.msra.mxu0 %v28
    %140 = vmatprep.subr.mxu0 %v33
    %141 = vmatpush1.msra.mxu0 %v32
    %142 = vmatprep.subr.mxu0 %v37
    %143 = vmatpush1.msra.mxu0 %v36
    %144 = vmatprep.subr.mxu0 %v41
    %145 = vmatpush1.msra.mxu0 %v40
    %146 = vmatprep.subr.mxu0 %v45
    %147 = vmatpush1.msra.mxu0 %v44
    %148 = vmatprep.subr.mxu0 %v65
    %149 = vmatpush1.msra.mxu0 %v62
    %150 = vmatprep.subr.mxu0 0.0
    %151 = vmatpush1.msra.mxu0 0.0
    %152 = vmatprep.subr.mxu0 0.0
    %153 = vmatpush1.msra.mxu0 0.0
    %154 = vmatprep.subr.mxu0 0.0
    %155 = vmatpush1.msra.mxu0 0.0
    %156 = vmatprep.subr.mxu0 0.0
    %157 = vmatpush1.msra.mxu0 0.0
    %158 = vmatprep.subr.mxu0 0.0
    %159 = vmatpush1.msra.mxu0 0.0
    %160 = vmatprep.subr.mxu0 0.0
    %161 = vmatpush1.msra.mxu0 0.0
    %162 = vmatprep.subr.mxu0 0.0
    %163 = vmatpush1.msra.mxu0 0.0
    %164 = vmatprep.subr.mxu0 0.0
    %165 = vmatpush1.msra.mxu0 0.0
    %166 = vmatprep.subr.mxu0 0.0
    %167 = vmatpush1.msra.mxu0 0.0
    %168 = vmatprep.subr.mxu0 0.0
    %169 = vmatpush1.msra.mxu0 0.0
    %170 = vmatprep.subr.mxu0 0.0
    %171 = vmatpush1.msra.mxu0 0.0
    %172 = vmatprep.subr.mxu0 0.0
    %173 = vmatpush1.msra.mxu0 0.0
    %174 = vmatprep.subr.mxu0 0.0
    %175 = vmatpush1.msra.mxu0 0.0
    %176 = vmatprep.subr.mxu0 0.0
    %177 = vmatpush1.msra.mxu0 0.0
    %178 = vmatprep.subr.mxu0 0.0
    %179 = vmatpush1.msra.mxu0 0.0
    %180 = vmatprep.subr.mxu0 0.0
    %181 = vmatpush1.msra.mxu0 0.0
    %182 = vmatprep.subr.mxu0 0.0
    %183 = vmatpush1.msra.mxu0 0.0
    %184 = vmatprep.subr.mxu0 0.0
    %185 = vmatpush1.msra.mxu0 0.0
    %186 = vmatprep.subr.mxu0 0.0
    %187 = vmatpush1.msra.mxu0 0.0
    %188 = vmatprep.subr.mxu0 0.0
    %189 = vmatpush1.msra.mxu0 0.0
    %190 = vmatprep.subr.mxu0 0.0
    %191 = vmatpush1.msra.mxu0 0.0
    %192 = vmatprep.subr.mxu0 0.0
    %193 = vmatpush1.msra.mxu0 0.0
    %194 = vmatprep.subr.mxu0 0.0
    %195 = vmatpush1.msra.mxu0 0.0
    %196 = vmatprep.subr.mxu0 0.0
    %197 = vmatpush1.msra.mxu0 0.0
    %198 = vmatprep.subr.mxu0 0.0
    %199 = vmatpush1.msra.mxu0 0.0
    %200 = vmatprep.subr.mxu0 0.0
    %201 = vmatpush1.msra.mxu0 0.0
    %202 = vmatprep.mubr.f32.mxu0 0.0
    %203 = vmatmul.mubr.f32.gmra.mrb[0].mxu0 %v52
    %v204 = vpop.f32.mrb[0].mxu0
    %v205 = vadd.f32 0.0, %v204
    %v206 = vpop.f32.mrb[0].mxu0
    %v207 = vadd.f32 0.0, %v206
    %208 = vdwg.mxu0
    %209 = vst [vmem:[%s2] sm:$0xff] %v134
    %210 = vst [vmem:[%s2 + $0x8] sm:$0xff] %v136
    %211 = vst [vmem:[%s2 + $0x10] sm:$0xff] %v205
    %212 = vst [vmem:[%s2 + $0x18] sm:$0xff] %v207
    // Predicated region
    $region14: #{forward.1} parent=1 // pred_check
      _
    $region15: #{forward.1} parent=1 // pred_check_branch
      %214 = sbr.rel (0) target = $region17
    $region16: #{forward.1} parent=1 // pred_region
      _
    $region17: #{forward.1} parent=1 // pred_fallthru
      _
    // Predicated region
    $region18: #{forward.1} parent=1 // pred_check
      _
    $region19: #{forward.1} parent=1 // pred_check_branch
      %216 = sbr.rel (0) target = $region21
    $region20: #{forward.1} parent=1 // pred_region
      _
    $region21: #{forward.1} parent=1 // pred_fallthru
      _
    %217 = vsyncpa [#allocation3], 1

</llo_original>
